<compile_context>
chip_gen: v7x
topology: tpu7x:2x2x1
jax: 0.10.0
libtpu: 0.0.40
codegen_flags: <defaults>
</compile_context>

<pallas_src>
import math

import jax
import jax.numpy as jnp
from jax.experimental import pallas as pl
from jax.experimental.pallas import tpu as pltpu


# --------------------------------------------------------------------------
# helpers
# --------------------------------------------------------------------------
def _round_up(x, m):
    return ((x + m - 1) // m) * m


def _vmem_cap_bytes():
    """~75% of physical per-core VMEM (v5e/v6e: 128 MiB, v7x: 64 MiB)."""
    try:
        cap = int(pltpu.get_tpu_info().vmem_capacity_bytes)
    except Exception:
        cap = 64 * 2 ** 20           # conservative (v7x-sized) fallback
    return max(16 * 2 ** 20, (cap * 3) // 4)


def _pick_tile(total, max_tile, quantum):
    """Largest multiple of `quantum` <= max_tile dividing `total`, else the
    full extent (a full-extent block is always a legal BlockSpec)."""
    if total <= max_tile:
        return total
    t = (max_tile // quantum) * quantum
    while t >= quantum:
        if total % t == 0:
            return t
        t -= quantum
    return total


# --------------------------------------------------------------------------
# 3x3 / stride-2 conv  (tiled matmul over im2col)
# --------------------------------------------------------------------------
def conv2d_k3_s2_pallas(x, w, b, padding=1, *, max_rows=1024, max_k=2048,
                        max_cout_tile=512, compute_dtype=jnp.bfloat16):
    """x: (N, Cin, H, W), w: (Cout, Cin, 3, 3), b: (Cout,) -> (N, Cout, Ho, Wo)."""
    N, Cin, H, W = x.shape
    Cout = w.shape[0]
    Ho = (H + 2 * padding - 3) // 2 + 1
    Wo = (W + 2 * padding - 3) // 2 + 1
    assert Ho >= 1 and Wo >= 1

    cdt = compute_dtype if compute_dtype is not None else x.dtype
    out_dtype = x.dtype

    # ---- wrapper-side stride-2 im2col (XLA; ~2.25x of the input in HBM) -----
    x_nhwc = jnp.transpose(x, (0, 2, 3, 1))
    pad_b = max(0, 2 * Ho + 1 - (H + padding))
    pad_r = max(0, 2 * Wo + 1 - (W + padding))
    xp = jnp.pad(x_nhwc, ((0, 0), (padding, pad_b), (padding, pad_r), (0, 0)))
    # xi[n, ho, wo, (ky*3+kx)*Cin + ci] = xp[n, 2*ho + ky, 2*wo + kx, ci]
    taps = [xp[:, ky:ky + 2 * Ho:2, kx:kx + 2 * Wo:2, :]
            for ky in range(3) for kx in range(3)]
    K = 9 * Cin
    xi = jnp.concatenate(taps, axis=-1).reshape(N * Ho * Wo, K).astype(cdt)

    M = N * Ho * Wo                         # batch fused into the M axis
    Mp = _round_up(M, 8)                    # sublane-aligned row tiles
    if Mp != M:
        xi = jnp.pad(xi, ((0, Mp - M), (0, 0)))

    # weights: w_flat[(ky*3+kx)*Cin + ci, co] = w[co, ci, ky, kx]
    Cpad = _round_up(Cout, 128)             # lane-dense output stores
    w_flat = jnp.transpose(w, (2, 3, 1, 0)).reshape(K, Cout)
    if Cpad != Cout:
        w_flat = jnp.pad(w_flat, ((0, 0), (0, Cpad - Cout)))
    w_flat = w_flat.astype(cdt)
    b_pad = jnp.pad(b, (0, Cpad - Cout)).reshape(1, Cpad).astype(jnp.float32)

    # ---- tiling --------------------------------------------------------------
    tm = _pick_tile(Mp, max_rows, 8)
    tk = _pick_tile(K, max_k, 128)
    tn = _pick_tile(Cpad, max_cout_tile, 128)
    grid = (Mp // tm, Cpad // tn, K // tk)  # K innermost (reduction)

    def conv_kernel(x_ref, w_ref, b_ref, o_ref, acc_ref):
        k = pl.program_id(2)

        @pl.when(k == 0)
        def _init():
            acc_ref[...] = jnp.zeros_like(acc_ref)

        acc_ref[...] += jnp.dot(x_ref[...], w_ref[...],
                                preferred_element_type=jnp.float32)

        @pl.when(k == pl.num_programs(2) - 1)
        def _finish():
            o_ref[...] = (acc_ref[...] + b_ref[...]).astype(o_ref.dtype)

    in_item = jnp.dtype(cdt).itemsize
    out_item = jnp.dtype(out_dtype).itemsize
    need = (2 * tm * tk * in_item           # x tile (double-buffered)
            + 2 * tk * tn * in_item         # weight tile (double-buffered)
            + 2 * tm * tn * out_item        # output tile (double-buffered)
            + tm * tn * 4                   # f32 accumulator scratch
            + 2 * tn * 4)                   # bias tile
    vmem_limit = int(min(_vmem_cap_bytes(), max(24 * 2 ** 20, int(1.5 * need))))

    out = pl.pallas_call(
        conv_kernel,
        out_shape=jax.ShapeDtypeStruct((Mp, Cpad), out_dtype),
        grid_spec=pltpu.PrefetchScalarGridSpec(
            num_scalar_prefetch=0,
            grid=grid,
            in_specs=[
                pl.BlockSpec((tm, tk), lambda i, j, k: (i, k)),
                pl.BlockSpec((tk, tn), lambda i, j, k: (k, j)),
                pl.BlockSpec((1, tn), lambda i, j, k: (0, j)),
            ],
            out_specs=pl.BlockSpec((tm, tn), lambda i, j, k: (i, j)),
            scratch_shapes=[pltpu.VMEM((tm, tn), jnp.float32)],
        ),
        compiler_params=pltpu.CompilerParams(
            dimension_semantics=("parallel", "parallel", "arbitrary"),
            vmem_limit_bytes=vmem_limit,
        ),
    )(xi, w_flat, b_pad)

    out = out[:M, :Cout].reshape(N, Ho, Wo, Cout)
    return jnp.transpose(out, (0, 3, 1, 2))            # back to NCHW


# --------------------------------------------------------------------------
# 2x2 / stride-2 average pool
# --------------------------------------------------------------------------
def avg_pool2d_s2_pallas(x, *, max_block_bytes=8 * 2 ** 20):
    """x: (N, C, H, W) -> (N, C, H//2, W//2) (floor mode, like nn.AvgPool2d(2, 2))."""
    N, C, H, W = x.shape
    Ho, Wo = H // 2, W // 2
    assert Ho >= 1 and Wo >= 1
    x_nhwc = jnp.transpose(x, (0, 2, 3, 1))
    if H != 2 * Ho or W != 2 * Wo:
        x_nhwc = x_nhwc[:, :2 * Ho, :2 * Wo, :]
    # Free reshape of the contiguous NHWC buffer; batch is fused into the
    # leading row-tile axis so small-Ho layers still get large blocks:
    #   x4[n*Ho + ho, dy, wo, dx*C + c] = x[n, 2*ho + dy, 2*wo + dx, c]
    R = N * Ho
    x4 = x_nhwc.reshape(R, 2, Wo, 2 * C)

    itemsize = jnp.dtype(x.dtype).itemsize
    row_bytes = 4 * Wo * C * itemsize        # input bytes per output row
    t = 1
    for cand in range(R, 0, -1):
        if R % cand == 0 and cand * row_bytes <= max_block_bytes:
            t = cand
            break

    def pool_kernel(x_ref, o_ref):
        xt = x_ref[...].astype(jnp.float32)            # (t, 2, Wo, 2C)
        s = xt[:, 0] + xt[:, 1]                        # dy fold -> (t, Wo, 2C)
        # dx fold at lane offset C: lane-aligned whenever C % 128 == 0 (the
        # usual UNet case); still correct (just masked stores) for tiny C.
        o_ref[...] = (0.25 * (s[:, :, :C] + s[:, :, C:])).astype(o_ref.dtype)

    need = (2 * t * 4 * Wo * C * itemsize    # input (double-buffered)
            + 2 * t * Wo * C * itemsize      # output (double-buffered)
            + 3 * t * Wo * C * 4)            # f32 intermediates
    vmem_limit = int(min(_vmem_cap_bytes(), max(16 * 2 ** 20, int(1.5 * need))))

    out = pl.pallas_call(
        pool_kernel,
        out_shape=jax.ShapeDtypeStruct((R, Wo, C), x.dtype),
        grid_spec=pltpu.PrefetchScalarGridSpec(
            num_scalar_prefetch=0,
            grid=(R // t,),
            in_specs=[pl.BlockSpec((t, 2, Wo, 2 * C), lambda i: (i, 0, 0, 0))],
            out_specs=pl.BlockSpec((t, Wo, C), lambda i: (i, 0, 0)),
        ),
        compiler_params=pltpu.CompilerParams(
            dimension_semantics=("parallel",),
            vmem_limit_bytes=vmem_limit,
        ),
    )(x4)
    out = out.reshape(N, Ho, Wo, C)
    return jnp.transpose(out, (0, 3, 1, 2))


# --------------------------------------------------------------------------
# Module wrapper
# --------------------------------------------------------------------------
class DownsamplePallas:
    """Pallas port of Downsample (dims=2 only).  Input/output layout: NCHW."""

    def __init__(self, channels, use_conv, dims=2, out_channels=None, padding=1,
                 key=jax.random.PRNGKey(0)):
        assert dims == 2, "only dims=2 implemented"
        # TODO(synk): dims=1 / dims=3 variants (Conv1d/Conv3d, AvgPool1d/3d) not ported.
        self.channels = channels
        self.out_channels = out_channels or channels
        self.use_conv = use_conv
        self.padding = padding
        if use_conv:
            # PyTorch Conv2d default init: U(-1/sqrt(fan_in), 1/sqrt(fan_in))
            fan_in = channels * 3 * 3
            bound = 1.0 / math.sqrt(fan_in)
            kw, kb = jax.random.split(key)
            self.weight = jax.random.uniform(
                kw, (self.out_channels, channels, 3, 3), jnp.float32, -bound, bound)
            self.bias = jax.random.uniform(
                kb, (self.out_channels,), jnp.float32, -bound, bound)
        else:
            assert self.channels == self.out_channels

    def __call__(self, x):
        assert x.shape[1] == self.channels
        if self.use_conv:
            # bf16 MXU compute with f32 accumulation by default; pass
            # compute_dtype=None to conv2d_k3_s2_pallas for full-f32 matmuls.
            return conv2d_k3_s2_pallas(x, self.weight, self.bias, self.padding)
        return avg_pool2d_s2_pallas(x)


# --------------------------------------------------------------------------
# Plain-JAX references for correctness checks
# --------------------------------------------------------------------------
def _ref_conv(x, w, b, padding):
    y = jax.lax.conv_general_dilated(
        x, w, window_strides=(2, 2),
        padding=((padding, padding), (padding, padding)),
        dimension_numbers=("NCHW", "OIHW", "NCHW"))
    return y + b[None, :, None, None]


def _ref_avgpool(x):
    N, C, H, W = x.shape
    return x.reshape(N, C, H // 2, 2, W // 2, 2).mean(axis=(3, 5))


if __name__ == "__main__":
    key = jax.random.PRNGKey(0)
    kx, kp = jax.random.split(key)
    x = jax.random.normal(kx, (2, 4, 16, 16), jnp.float32)   # NCHW

    # use_conv=True path (Conv2d(4, 4, 3, stride=2, padding=1))
    mod_conv = DownsamplePallas(channels=4, use_conv=True, dims=2, key=kp)
    y_conv = jax.block_until_ready(mod_conv(x))
    y_ref = _ref_conv(x, mod_conv.weight, mod_conv.bias, mod_conv.padding)
    assert y_conv.shape == (2, 4, 8, 8)
    err = float(jnp.max(jnp.abs(y_conv - y_ref)))
    # bf16 MXU compute with f32 accumulation -> loosened tolerance.
    assert jnp.allclose(y_conv, y_ref, atol=5e-2, rtol=5e-2), f"conv mismatch {err}"

    # use_conv=False path (AvgPool2d(kernel_size=2, stride=2))
    mod_pool = DownsamplePallas(channels=4, use_conv=False, dims=2)
    y_pool = jax.block_until_ready(mod_pool(x))
    assert y_pool.shape == (2, 4, 8, 8)
    assert jnp.allclose(y_pool, _ref_avgpool(x), atol=1e-5, rtol=1e-5)

    print("KERNEL_OK")
</pallas_src>

<mosaic_0001>
module attributes {stable_mosaic.version = 11 : i64} {
  func.func @conv_kernel(%arg0: i32, %arg1: i32, %arg2: i32, %arg3: memref<128x36xbf16, #tpu.memory_space<vmem>>, %arg4: memref<36x128xbf16, #tpu.memory_space<vmem>>, %arg5: memref<1x128xf32, #tpu.memory_space<vmem>>, %arg6: memref<128x128xf32, #tpu.memory_space<vmem>>, %arg7: memref<128x128xf32, #tpu.memory_space<vmem>>) attributes {dimension_semantics = [#tpu.dimension_semantics<parallel>, #tpu.dimension_semantics<parallel>, #tpu.dimension_semantics<arbitrary>], iteration_bounds = array<i64: 1, 1, 1>, scalar_prefetch = 0 : i64, scratch_operands = 1 : i64, tpu.core_type = #tpu.core_type<tc>, window_params = [{transform_indices = @transform_0, window_bounds = array<i64: 128, 36>}, {transform_indices = @transform_1, window_bounds = array<i64: 36, 128>}, {transform_indices = @transform_2, window_bounds = array<i64: 1, 128>}, {transform_indices = @transform_3, window_bounds = array<i64: 128, 128>}]} {
    %c0_i32 = arith.constant 0 : i32
    %0 = arith.cmpi eq, %arg2, %c0_i32 : i32
    %1 = arith.extui %0 : i1 to i32
    %c0_i32_0 = arith.constant 0 : i32
    %2 = arith.cmpi ne, %1, %c0_i32_0 : i32
    scf.if %2 {
      %cst_10 = arith.constant 0.000000e+00 : f32
      %12 = vector.broadcast %cst_10 : f32 to vector<128x128xf32>
      %c0_11 = arith.constant 0 : index
      %c0_12 = arith.constant 0 : index
      %13 = vector.load %arg7[%c0_11, %c0_12] : memref<128x128xf32, #tpu.memory_space<vmem>>, vector<128x128xf32>
      tpu.vector_store %arg7[%c0_11, %c0_12], %12 {strides = array<i32>} : memref<128x128xf32, #tpu.memory_space<vmem>>, vector<128x128xf32>,
    } else {
    }
    %c0 = arith.constant 0 : index
    %c0_1 = arith.constant 0 : index
    %3 = vector.load %arg7[%c0, %c0_1] : memref<128x128xf32, #tpu.memory_space<vmem>>, vector<128x128xf32>
    %c0_2 = arith.constant 0 : index
    %c0_3 = arith.constant 0 : index
    %4 = vector.load %arg3[%c0_2, %c0_3] : memref<128x36xbf16, #tpu.memory_space<vmem>>, vector<128x36xbf16>
    %c0_4 = arith.constant 0 : index
    %c0_5 = arith.constant 0 : index
    %5 = vector.load %arg4[%c0_4, %c0_5] : memref<36x128xbf16, #tpu.memory_space<vmem>>, vector<36x128xbf16>
    %cst = arith.constant dense<0.000000e+00> : vector<128x128xf32>
    %6 = tpu.matmul %4, %5, %cst {dimension_numbers = #tpu.dot_dimension_numbers<[1], [0], [0], [1], [0, 0, 1, 1], [], []>} : vector<128x36xbf16>, vector<36x128xbf16>, vector<128x128xf32> -> vector<128x128xf32>
    %7 = arith.addf %3, %6 : vector<128x128xf32>
    %c0_6 = arith.constant 0 : index
    %c0_7 = arith.constant 0 : index
    %8 = vector.load %arg7[%c0_6, %c0_7] : memref<128x128xf32, #tpu.memory_space<vmem>>, vector<128x128xf32>
    tpu.vector_store %arg7[%c0_6, %c0_7], %7 {strides = array<i32>} : memref<128x128xf32, #tpu.memory_space<vmem>>, vector<128x128xf32>,
    %c0_i32_8 = arith.constant 0 : i32
    %9 = arith.cmpi eq, %arg2, %c0_i32_8 : i32
    %10 = arith.extui %9 : i1 to i32
    %c0_i32_9 = arith.constant 0 : i32
    %11 = arith.cmpi ne, %10, %c0_i32_9 : i32
    scf.if %11 {
      %c0_10 = arith.constant 0 : index
      %c0_11 = arith.constant 0 : index
      %12 = vector.load %arg7[%c0_10, %c0_11] : memref<128x128xf32, #tpu.memory_space<vmem>>, vector<128x128xf32>
      %c0_12 = arith.constant 0 : index
      %c0_13 = arith.constant 0 : index
      %13 = vector.load %arg5[%c0_12, %c0_13] : memref<1x128xf32, #tpu.memory_space<vmem>>, vector<1x128xf32>
      %14 = vector.broadcast %13 : vector<1x128xf32> to vector<128x128xf32>
      %15 = arith.addf %12, %14 : vector<128x128xf32>
      %c0_14 = arith.constant 0 : index
      %c0_15 = arith.constant 0 : index
      %16 = vector.load %arg6[%c0_14, %c0_15] : memref<128x128xf32, #tpu.memory_space<vmem>>, vector<128x128xf32>
      tpu.vector_store %arg6[%c0_14, %c0_15], %15 {strides = array<i32>} : memref<128x128xf32, #tpu.memory_space<vmem>>, vector<128x128xf32>,
    } else {
    }
    return
  }
  func.func @transform_0(%arg0: i32, %arg1: i32, %arg2: i32) -> (i32, i32) {
    %c0_i32 = arith.constant 0 : i32
    return %arg0, %arg2 : i32, i32
  }
  func.func @transform_1(%arg0: i32, %arg1: i32, %arg2: i32) -> (i32, i32) {
    %c0_i32 = arith.constant 0 : i32
    return %arg2, %arg1 : i32, i32
  }
  func.func @transform_2(%arg0: i32, %arg1: i32, %arg2: i32) -> (i32, i32) {
    %c0_i32 = arith.constant 0 : i32
    %c0_i32_0 = arith.constant 0 : i32
    return %c0_i32, %arg1 : i32, i32
  }
  func.func @transform_3(%arg0: i32, %arg1: i32, %arg2: i32) -> (i32, i32) {
    %c0_i32 = arith.constant 0 : i32
    return %arg0, %arg1 : i32, i32
  }
}

</mosaic_0001>

<llo_original>
// kernel: tpu_custom_call.1
$region0: #{tpu_custom_call.1}
  #allocation0 [shape = 'u32[]', space=smem, size = 0x4, offset = 0x4, fixed_abs, tag = 'smem constant byte address 0x4 - core index']
  #allocation1 [shape = 'u32[144,128]{1,0:T(1,128)}', space=vmem, size = 0x12000, scoped, tag = 'internal scratch']
  #allocation2 [shape = 'f32[128,128]{1,0:T(8,128)}', space=vmem, size = 0x10000, scoped, tag = 'scratch operand']
  %s0 = inlined_call_operand.vmem [shape: bf16[128,36], index: 0, kind: input, shape index: {}]
  %s1 = inlined_call_operand.vmem [shape: bf16[36,128], index: 1, kind: input, shape index: {}]
  %s2 = inlined_call_operand.vmem [shape: f32[1,128], index: 2, kind: input, shape index: {}]
  %s3 = inlined_call_operand.hbm [shape: f32[128,128], index: 3, kind: output, shape index: {}]
  %s4 = sld [smem:[#allocation0]]
  $region30: #{tpu_custom_call.1} parent=0
    _
  %s6 = ssub.s32 1, %s4
  %s7 = scalar_select 0, %s6, %s4
  $region1: #{tpu_custom_call.1} parent=0
    #allocation3 [shape = 'u8[65536]{0}', space=vmem, size = 0x10000, scoped, tag = 'output window, operand 0, single buffered']
    #allocation4 [shape = 's32[1]{0}', space=sflag, size = 0x4, scoped, tag = 'scoped memory for tpu_custom_call.1']
    %8 = vsyncpa [#allocation4], 0
    // Predicated region
    $region2: #{tpu_custom_call.1} parent=1 // pred_check
      _
    $region3: #{tpu_custom_call.1} parent=1 // pred_check_branch
      %10 = sbr.rel (0) target = $region5
    $region4: #{tpu_custom_call.1} parent=1 // pred_region
      _
    $region5: #{tpu_custom_call.1} parent=1 // pred_fallthru
      _
    // Predicated region
    $region6: #{tpu_custom_call.1} parent=1 // pred_check
      _
    $region7: #{tpu_custom_call.1} parent=1 // pred_check_branch
      %12 = sbr.rel (0) target = $region9
    $region8: #{tpu_custom_call.1} parent=1 // pred_region
      _
    $region9: #{tpu_custom_call.1} parent=1 // pred_fallthru
      _
    // Predicated region
    $region10: #{tpu_custom_call.1} parent=1 // pred_check
      _
    $region11: #{tpu_custom_call.1} parent=1 // pred_check_branch
      %14 = sbr.rel (0) target = $region13
    $region12: #{tpu_custom_call.1} parent=1 // pred_region
      _
    $region13: #{tpu_custom_call.1} parent=1 // pred_fallthru
      _
    %p16 = scmp.eq.s32.totalorder 0, 0
    // Predicated region
    $region14: #{tpu_custom_call.1} parent=1 // pred_check
      %p17 = pneg %p16
    $region15: #{tpu_custom_call.1} parent=1 // pred_check_branch
      %19 = sbr.rel (%p17) target = $region17
    $region16: #{tpu_custom_call.1} parent=1 // pred_region
      %20 = vst [vmem:[#allocation2] sm:$0xff] 0.0
      %21 = vst [vmem:[#allocation2 + $0x8] sm:$0xff] 0.0
      %22 = vst [vmem:[#allocation2 + $0x10] sm:$0xff] 0.0
      %23 = vst [vmem:[#allocation2 + $0x18] sm:$0xff] 0.0
      %24 = vst [vmem:[#allocation2 + $0x20] sm:$0xff] 0.0
      %25 = vst [vmem:[#allocation2 + $0x28] sm:$0xff] 0.0
      %26 = vst [vmem:[#allocation2 + $0x30] sm:$0xff] 0.0
      %27 = vst [vmem:[#allocation2 + $0x38] sm:$0xff] 0.0
      %28 = vst [vmem:[#allocation2 + $0x40] sm:$0xff] 0.0
      %29 = vst [vmem:[#allocation2 + $0x48] sm:$0xff] 0.0
      %30 = vst [vmem:[#allocation2 + $0x50] sm:$0xff] 0.0
      %31 = vst [vmem:[#allocation2 + $0x58] sm:$0xff] 0.0
      %32 = vst [vmem:[#allocation2 + $0x60] sm:$0xff] 0.0
      %33 = vst [vmem:[#allocation2 + $0x68] sm:$0xff] 0.0
      %34 = vst [vmem:[#allocation2 + $0x70] sm:$0xff] 0.0
      %35 = vst [vmem:[#allocation2 + $0x78] sm:$0xff] 0.0
    $region17: #{tpu_custom_call.1} parent=1 // pred_fallthru
      _
    %v36 = vld [vmem:[#allocation2] sm:$0xff]
    %v37 = vld [vmem:[#allocation2 + $0x8] sm:$0xff]
    %v38 = vld [vmem:[#allocation2 + $0x10] sm:$0xff]
    %v39 = vld [vmem:[#allocation2 + $0x18] sm:$0xff]
    %v40 = vld [vmem:[#allocation2 + $0x20] sm:$0xff]
    %v41 = vld [vmem:[#allocation2 + $0x28] sm:$0xff]
    %v42 = vld [vmem:[#allocation2 + $0x30] sm:$0xff]
    %v43 = vld [vmem:[#allocation2 + $0x38] sm:$0xff]
    %v44 = vld [vmem:[#allocation2 + $0x40] sm:$0xff]
    %v45 = vld [vmem:[#allocation2 + $0x48] sm:$0xff]
    %v46 = vld [vmem:[#allocation2 + $0x50] sm:$0xff]
    %v47 = vld [vmem:[#allocation2 + $0x58] sm:$0xff]
    %v48 = vld [vmem:[#allocation2 + $0x60] sm:$0xff]
    %v49 = vld [vmem:[#allocation2 + $0x68] sm:$0xff]
    %v50 = vld [vmem:[#allocation2 + $0x70] sm:$0xff]
    %v51 = vld [vmem:[#allocation2 + $0x78] sm:$0xff]
    %v52 = vld [vmem:[%s0] sm:$0xf]
    %v53 = vld [vmem:[%s0 + $0x4] sm:$0xf]
    %v54 = vld [vmem:[%s0 + $0x8] sm:$0xf]
    %v55 = vld [vmem:[%s0 + $0xc] sm:$0xf]
    %v56 = vld [vmem:[%s0 + $0x10] sm:$0xf]
    %v57 = vld [vmem:[%s0 + $0x14] sm:$0xf]
    %v58 = vld [vmem:[%s0 + $0x18] sm:$0xf]
    %v59 = vld [vmem:[%s0 + $0x1c] sm:$0xf]
    %v60 = vld [vmem:[%s0 + $0x20] sm:$0xf]
    %v61 = vld [vmem:[%s0 + $0x24] sm:$0xf]
    %v62 = vld [vmem:[%s0 + $0x28] sm:$0xf]
    %v63 = vld [vmem:[%s0 + $0x2c] sm:$0xf]
    %v64 = vld [vmem:[%s0 + $0x30] sm:$0xf]
    %v65 = vld [vmem:[%s0 + $0x34] sm:$0xf]
    %v66 = vld [vmem:[%s0 + $0x38] sm:$0xf]
    %v67 = vld [vmem:[%s0 + $0x3c] sm:$0xf]
    %v68 = vld [vmem:[%s1] sm:$0xf]
    %v69 = vld [vmem:[%s1 + $0x4] sm:$0xf]
    %v70 = vld [vmem:[%s1 + $0x8] sm:$0xf]
    %v71 = vld [vmem:[%s1 + $0xc] sm:$0xf]
    %v72 = vld [vmem:[%s1 + $0x10] sm:$0x3]
    %v89 = vunpack.c.l.b16 %v52
    %v90 = vunpack.c.l.b16 %v53
    %v91 = vunpack.c.l.b16 %v54
    %v92 = vunpack.c.l.b16 %v55
    %v93 = vunpack.c.l.b16 %v56
    %v94 = vunpack.c.l.b16 %v57
    %v95 = vunpack.c.l.b16 %v58
    %v96 = vunpack.c.l.b16 %v59
    %v97 = vunpack.c.l.b16 %v60
    %v98 = vunpack.c.l.b16 %v61
    %v99 = vunpack.c.l.b16 %v62
    %v100 = vunpack.c.l.b16 %v63
    %v101 = vunpack.c.l.b16 %v64
    %v102 = vunpack.c.l.b16 %v65
    %v103 = vunpack.c.l.b16 %v66
    %v104 = vunpack.c.l.b16 %v67
    %v105 = vpack.c.b16 %v90, %v89
    %v106 = vpack.c.b16 %v92, %v91
    %v107 = vpack.c.b16 %v94, %v93
    %v108 = vpack.c.b16 %v96, %v95
    %v109 = vpack.c.b16 %v98, %v97
    %v110 = vpack.c.b16 %v100, %v99
    %v111 = vpack.c.b16 %v102, %v101
    %v112 = vpack.c.b16 %v104, %v103
    %v118 = vunpack.c.l.b16 %v68
    %v119 = vunpack.c.l.b16 %v69
    %v120 = vunpack.c.l.b16 %v70
    %v121 = vunpack.c.l.b16 %v71
    %v122 = vunpack.c.l.b16 %v72
    %v123 = vpack.c.b16 %v119, %v118
    %v124 = vpack.c.b16 %v121, %v120
    %v125 = vpack.c.b16 %v122, %v122
    %vm128 = vcmask 293888
    %v130 = vsel %vm128, %v105, 0
    %v133 = vsel %vm128, %v106, 0
    %v136 = vsel %vm128, %v107, 0
    %v139 = vsel %vm128, %v108, 0
    %v142 = vsel %vm128, %v109, 0
    %v145 = vsel %vm128, %v110, 0
    %v148 = vsel %vm128, %v111, 0
    %v151 = vsel %vm128, %v112, 0
    %vm153 = vcmask 1041408
    %v155 = vsel %vm153, %v125, 0
    %157 = vmatprep.subr.bf16.mxu0 0
    %158 = vmatpush1.bf16.msra.mxu0 %v123
    %159 = vmatprep.subr.bf16.mxu0 0
    %160 = vmatpush1.bf16.msra.mxu0 %v124
    %161 = vmatprep.subr.bf16.mxu0 0
    %162 = vmatpush1.bf16.msra.mxu0 %v155
    %163 = vmatprep.subr.bf16.mxu0 0
    %164 = vmatpush1.bf16.msra.mxu0 0
    %165 = vmatprep.subr.bf16.mxu0 0
    %166 = vmatpush1.bf16.msra.mxu0 0
    %167 = vmatprep.subr.bf16.mxu0 0
    %168 = vmatpush1.bf16.msra.mxu0 0
    %169 = vmatprep.subr.bf16.mxu0 0
    %170 = vmatpush1.bf16.msra.mxu0 0
    %171 = vmatprep.subr.bf16.mxu0 0
    %172 = vmatpush1.bf16.msra.mxu0 0
    %173 = vmatprep.subr.bf16.mxu0 0
    %174 = vmatpush1.bf16.msra.mxu0 0
    %175 = vmatprep.subr.bf16.mxu0 0
    %176 = vmatpush1.bf16.msra.mxu0 0
    %177 = vmatprep.subr.bf16.mxu0 0
    %178 = vmatpush1.bf16.msra.mxu0 0
    %179 = vmatprep.subr.bf16.mxu0 0
    %180 = vmatpush1.bf16.msra.mxu0 0
    %181 = vmatprep.subr.bf16.mxu0 0
    %182 = vmatpush1.bf16.msra.mxu0 0
    %183 = vmatprep.subr.bf16.mxu0 0
    %184 = vmatpush1.bf16.msra.mxu0 0
    %185 = vmatprep.subr.bf16.mxu0 0
    %186 = vmatpush1.bf16.msra.mxu0 0
    %187 = vmatprep.subr.bf16.mxu0 0
    %188 = vmatpush1.bf16.msra.mxu0 0
    %189 = vmatprep.mubr.bf16.mxu0 0
    %190 = vmatmul.mubr.bf16.gmra.mrb[0].mxu0 %v130
    %v191 = vpop.f32.mrb[0].mxu0
    %v192 = vadd.f32 0.0, %v191
    %v193 = vpop.f32.mrb[0].mxu0
    %v194 = vpop.f32.mrb[0].mxu0
    %v195 = vadd.f32 0.0, %v194
    %v196 = vpop.f32.mrb[0].mxu0
    %197 = vmatprep.mubr.bf16.mxu0 0
    %198 = vmatmul.mubr.bf16.gmra.mrb[0].mxu0 %v133
    %v199 = vpop.f32.mrb[0].mxu0
    %v200 = vadd.f32 0.0, %v199
    %v201 = vpop.f32.mrb[0].mxu0
    %v202 = vpop.f32.mrb[0].mxu0
    %v203 = vadd.f32 0.0, %v202
    %v204 = vpop.f32.mrb[0].mxu0
    %205 = vmatprep.mubr.bf16.mxu0 0
    %206 = vmatmul.mubr.bf16.gmra.mrb[0].mxu0 %v136
    %v207 = vpop.f32.mrb[0].mxu0
    %v208 = vadd.f32 0.0, %v207
    %v209 = vpop.f32.mrb[0].mxu0
    %v210 = vpop.f32.mrb[0].mxu0
    %v211 = vadd.f32 0.0, %v210
    %v212 = vpop.f32.mrb[0].mxu0
    %213 = vmatprep.mubr.bf16.mxu0 0
    %214 = vmatmul.mubr.bf16.gmra.mrb[0].mxu0 %v139
    %v215 = vpop.f32.mrb[0].mxu0
    %v216 = vadd.f32 0.0, %v215
    %v217 = vpop.f32.mrb[0].mxu0
    %v218 = vpop.f32.mrb[0].mxu0
    %v219 = vadd.f32 0.0, %v218
    %v220 = vpop.f32.mrb[0].mxu0
    %221 = vmatprep.mubr.bf16.mxu0 0
    %222 = vmatmul.mubr.bf16.gmra.mrb[0].mxu0 %v142
    %v223 = vpop.f32.mrb[0].mxu0
    %v224 = vadd.f32 0.0, %v223
    %v225 = vpop.f32.mrb[0].mxu0
    %v226 = vpop.f32.mrb[0].mxu0
    %v227 = vadd.f32 0.0, %v226
    %v228 = vpop.f32.mrb[0].mxu0
    %229 = vmatprep.mubr.bf16.mxu0 0
    %230 = vmatmul.mubr.bf16.gmra.mrb[0].mxu0 %v145
    %v231 = vpop.f32.mrb[0].mxu0
    %v232 = vadd.f32 0.0, %v231
    %v233 = vpop.f32.mrb[0].mxu0
    %v234 = vpop.f32.mrb[0].mxu0
    %v235 = vadd.f32 0.0, %v234
    %v236 = vpop.f32.mrb[0].mxu0
    %237 = vmatprep.mubr.bf16.mxu0 0
    %238 = vmatmul.mubr.bf16.gmra.mrb[0].mxu0 %v148
    %v239 = vpop.f32.mrb[0].mxu0
    %v240 = vadd.f32 0.0, %v239
    %v241 = vpop.f32.mrb[0].mxu0
    %v242 = vpop.f32.mrb[0].mxu0
    %v243 = vadd.f32 0.0, %v242
    %v244 = vpop.f32.mrb[0].mxu0
    %245 = vmatprep.mubr.bf16.mxu0 0
    %246 = vmatmul.mubr.bf16.gmra.mrb[0].mxu0 %v151
    %v247 = vpop.f32.mrb[0].mxu0
    %v248 = vadd.f32 0.0, %v247
    %v249 = vpop.f32.mrb[0].mxu0
    %v250 = vpop.f32.mrb[0].mxu0
    %v251 = vadd.f32 0.0, %v250
    %v252 = vpop.f32.mrb[0].mxu0
    %253 = vdwg.mxu0
    %v254 = vadd.f32 %v36, %v192
    %v255 = vadd.f32 %v37, %v195
    %v256 = vadd.f32 %v38, %v200
    %v257 = vadd.f32 %v39, %v203
    %v258 = vadd.f32 %v40, %v208
    %v259 = vadd.f32 %v41, %v211
    %v260 = vadd.f32 %v42, %v216
    %v261 = vadd.f32 %v43, %v219
    %v262 = vadd.f32 %v44, %v224
    %v263 = vadd.f32 %v45, %v227
    %v264 = vadd.f32 %v46, %v232
    %v265 = vadd.f32 %v47, %v235
    %v266 = vadd.f32 %v48, %v240
    %v267 = vadd.f32 %v49, %v243
    %v268 = vadd.f32 %v50, %v248
    %v269 = vadd.f32 %v51, %v251
    %270 = vst [vmem:[#allocation2] sm:$0xff] %v254
    %271 = vst [vmem:[#allocation2 + $0x8] sm:$0xff] %v255
    %272 = vst [vmem:[#allocation2 + $0x10] sm:$0xff] %v256
    %273 = vst [vmem:[#allocation2 + $0x18] sm:$0xff] %v257
    %274 = vst [vmem:[#allocation2 + $0x20] sm:$0xff] %v258
    %275 = vst [vmem:[#allocation2 + $0x28] sm:$0xff] %v259
    %276 = vst [vmem:[#allocation2 + $0x30] sm:$0xff] %v260
    %277 = vst [vmem:[#allocation2 + $0x38] sm:$0xff] %v261
    %278 = vst [vmem:[#allocation2 + $0x40] sm:$0xff] %v262
    %279 = vst [vmem:[#allocation2 + $0x48] sm:$0xff] %v263
    %280 = vst [vmem:[#allocation2 + $0x50] sm:$0xff] %v264
    %281 = vst [vmem:[#allocation2 + $0x58] sm:$0xff] %v265
    %282 = vst [vmem:[#allocation2 + $0x60] sm:$0xff] %v266
    %283 = vst [vmem:[#allocation2 + $0x68] sm:$0xff] %v267
    %284 = vst [vmem:[#allocation2 + $0x70] sm:$0xff] %v268
    %285 = vst [vmem:[#allocation2 + $0x78] sm:$0xff] %v269
    // Predicated region
    $region18: #{tpu_custom_call.1} parent=1 // pred_check
      %p286 = pneg %p16
    $region19: #{tpu_custom_call.1} parent=1 // pred_check_branch
      %288 = sbr.rel (%p286) target = $region21
    $region20: #{tpu_custom_call.1} parent=1 // pred_region
      %v289 = vld [vmem:[#allocation2] sm:$0xff]
      %v290 = vld [vmem:[#allocation2 + $0x8] sm:$0xff]
      %v291 = vld [vmem:[#allocation2 + $0x10] sm:$0xff]
      %v292 = vld [vmem:[#allocation2 + $0x18] sm:$0xff]
      %v293 = vld [vmem:[#allocation2 + $0x20] sm:$0xff]
      %v294 = vld [vmem:[#allocation2 + $0x28] sm:$0xff]
      %v295 = vld [vmem:[#allocation2 + $0x30] sm:$0xff]
      %v296 = vld [vmem:[#allocation2 + $0x38] sm:$0xff]
      %v297 = vld [vmem:[#allocation2 + $0x40] sm:$0xff]
      %v298 = vld [vmem:[#allocation2 + $0x48] sm:$0xff]
      %v299 = vld [vmem:[#allocation2 + $0x50] sm:$0xff]
      %v300 = vld [vmem:[#allocation2 + $0x58] sm:$0xff]
      %v301 = vld [vmem:[#allocation2 + $0x60] sm:$0xff]
      %v302 = vld [vmem:[#allocation2 + $0x68] sm:$0xff]
      %v303 = vld [vmem:[#allocation2 + $0x70] sm:$0xff]
      %v304 = vld [vmem:[#allocation2 + $0x78] sm:$0xff]
      %v305 = vld [vmem:[%s2] sm:$0x1]
      %v307 = vlaneseq
      %v308 = vshrl.u32 %v307, 7
      %v309 = vsub.s32 0, %v308
      %v310 = vrot.slane %v305, %v309
      %v312 = vadd.f32 %v289, %v310
      %v313 = vadd.f32 %v290, %v310
      %v314 = vadd.f32 %v291, %v310
      %v315 = vadd.f32 %v292, %v310
      %v316 = vadd.f32 %v293, %v310
      %v317 = vadd.f32 %v294, %v310
      %v318 = vadd.f32 %v295, %v310
      %v319 = vadd.f32 %v296, %v310
      %v320 = vadd.f32 %v297, %v310
      %v321 = vadd.f32 %v298, %v310
      %v322 = vadd.f32 %v299, %v310
      %v323 = vadd.f32 %v300, %v310
      %v324 = vadd.f32 %v301, %v310
      %v325 = vadd.f32 %v302, %v310
      %v326 = vadd.f32 %v303, %v310
      %v327 = vadd.f32 %v304, %v310
      %328 = vst [vmem:[#allocation3] sm:$0xff] %v312
      %329 = vst [vmem:[#allocation3 + $0x8] sm:$0xff] %v313
      %330 = vst [vmem:[#allocation3 + $0x10] sm:$0xff] %v314
      %331 = vst [vmem:[#allocation3 + $0x18] sm:$0xff] %v315
      %332 = vst [vmem:[#allocation3 + $0x20] sm:$0xff] %v316
      %333 = vst [vmem:[#allocation3 + $0x28] sm:$0xff] %v317
      %334 = vst [vmem:[#allocation3 + $0x30] sm:$0xff] %v318
      %335 = vst [vmem:[#allocation3 + $0x38] sm:$0xff] %v319
      %336 = vst [vmem:[#allocation3 + $0x40] sm:$0xff] %v320
      %337 = vst [vmem:[#allocation3 + $0x48] sm:$0xff] %v321
      %338 = vst [vmem:[#allocation3 + $0x50] sm:$0xff] %v322
      %339 = vst [vmem:[#allocation3 + $0x58] sm:$0xff] %v323
      %340 = vst [vmem:[#allocation3 + $0x60] sm:$0xff] %v324
      %341 = vst [vmem:[#allocation3 + $0x68] sm:$0xff] %v325
      %342 = vst [vmem:[#allocation3 + $0x70] sm:$0xff] %v326
      %343 = vst [vmem:[#allocation3 + $0x78] sm:$0xff] %v327
    $region21: #{tpu_custom_call.1} parent=1 // pred_fallthru
      _
    // Predicated region
    $region22: #{tpu_custom_call.1} parent=1 // pred_check
      _
    $region23: #{tpu_custom_call.1} parent=1 // pred_check_branch
      %345 = sbr.rel (0) target = $region25
    $region24: #{tpu_custom_call.1} parent=1 // pred_region
      %s347 = ssub.s32 2048, 2048
      %348 = vsyncadd [#allocation4], %s347
      %s349 = sshll.u32 [#allocation3], 4
      %s350 = int_to_ptr.vmem [resolvable:$true] %s349
      %355 = dma.vmem_to_hbm [thread:$0]  %s350, 2048, %s3, [#allocation4], 128, 128, 8
    $region25: #{tpu_custom_call.1} parent=1 // pred_fallthru
      _
    // Predicated region
    $region26: #{tpu_custom_call.1} parent=1 // pred_check
      _
    $region27: #{tpu_custom_call.1} parent=1 // pred_check_branch
      %357 = sbr.rel (0) target = $region29
    $region28: #{tpu_custom_call.1} parent=1 // pred_region
      %358 = dma.done [#allocation4], 2048
    $region29: #{tpu_custom_call.1} parent=1 // pred_fallthru
      _
    %359 = vsyncpa [#allocation4], 1

</llo_original>
